<compile_context>
chip_gen: v5e
topology: v5e:2x2
jax: 0.10.0
libtpu: 0.0.40
codegen_flags: <defaults>
</compile_context>

<pallas_src>
import functools

import jax
import jax.numpy as jnp
from jax.experimental import pallas as pl
from jax.experimental.pallas import tpu as pltpu

_MIB = 1024 * 1024
_LANE = 128
_SUBLANE = 8


def _cdiv(a, b):
    return -(-a // b)


def _vmem_capacity_bytes():
    try:
        return int(pltpu.get_tpu_info().vmem_capacity_bytes)
    except Exception:
        return 128 * _MIB  # v5e/v6e default


def _choose_tiling(B, C, HW, itemsize, vmem_cap):
    """Pick (hw_sub, n_sub_padded, hw_padded, vmem_limit_bytes)."""
    n_sub0 = _cdiv(HW, _LANE)

    small_vmem = vmem_cap <= 80 * _MIB                 # v7x-class (64 MiB / TC)
    target_f32 = (3 if small_vmem else 4) * _MIB       # f32 working-block target
    cap = (48 if small_vmem else 64) * _MIB            # vmem_limit ceiling
    usable = cap - 8 * _MIB                            # headroom for temps/spills

    # VMEM-budget bound; floor at 32 sublanes so each per-channel DMA chunk stays
    # >=16 KiB contiguous even for large C.
    budget_sub = max(32, target_f32 // (C * _LANE * 4))
    # Hard cap: double-buffered input + output blocks must fit under `usable`.
    hard_sub = max(_SUBLANE, usable // (4 * C * _LANE * itemsize))
    # Keep >= ~8 total grid steps (software pipelining, v7x 2-TC sharding).
    min_steps = 8
    steps_sub = _cdiv(n_sub0, _cdiv(min_steps, max(B, 1)))

    hw_sub = min(n_sub0, budget_sub, hard_sub, max(_SUBLANE, steps_sub))

    if hw_sub >= n_sub0:
        # Single spatial tile: block dim == full array dim, so no mult-of-8 need.
        hw_sub = n_sub0
        n_sub = n_sub0
    else:
        hw_sub = max(_SUBLANE, (hw_sub // _SUBLANE) * _SUBLANE)
        n_sub = _cdiv(n_sub0, hw_sub) * hw_sub
    hw_pad = n_sub * _LANE

    block_in = C * hw_sub * _LANE * itemsize
    temps = 10 * hw_sub * _LANE * 4                    # f32 planes + slack
    footprint = 4 * block_in + temps + 2 * _MIB        # 2x in + 2x out buffers
    vmem_limit = int(min(cap, max(32 * _MIB, footprint)))
    return hw_sub, n_sub, hw_pad, vmem_limit


def _ln_chan_kernel(x_ref, g_ref, o_ref, *, eps, inv_c, n_chan, unroll):
    # x_ref / o_ref: (1, C, hw_sub, 128) VMEM;  g_ref: (C,) f32 SMEM.
    hw_sub = x_ref.shape[2]
    zero = jnp.zeros((hw_sub, _LANE), jnp.float32)

    # ---- Pass 1: stream over channels, accumulate sum / sum-of-squares ----
    if unroll:
        s, ss = zero, zero
        for c in range(n_chan):
            xc = x_ref[0, c].astype(jnp.float32)
            s = s + xc
            ss = ss + xc * xc
    else:
        def stats_body(c, carry):
            s_acc, ss_acc = carry
            xc = x_ref[0, c].astype(jnp.float32)
            return s_acc + xc, ss_acc + xc * xc

        s, ss = jax.lax.fori_loop(0, n_chan, stats_body, (zero, zero))

    mean = s * inv_c
    var = jnp.maximum(ss * inv_c - mean * mean, 0.0)   # torch var(unbiased=False)
    inv = jax.lax.rsqrt(var + eps)

    # ---- Pass 2: normalize; scale_c = inv * gamma[c] (scalar from SMEM) ----
    if unroll:
        for c in range(n_chan):
            scale = inv * g_ref[c]
            xc = x_ref[0, c].astype(jnp.float32)
            o_ref[0, c] = ((xc - mean) * scale).astype(o_ref.dtype)
    else:
        def norm_body(c, _):
            scale = inv * g_ref[c]
            xc = x_ref[0, c].astype(jnp.float32)
            o_ref[0, c] = ((xc - mean) * scale).astype(o_ref.dtype)
            return 0

        jax.lax.fori_loop(0, n_chan, norm_body, 0)


def layernorm_chan(x, gamma, eps=1e-5):
    """x: (B, C, H, W) NCHW, gamma: broadcastable to (1, C, 1, 1). Returns (B, C, H, W)."""
    B, C, H, W = x.shape
    HW = H * W
    itemsize = x.dtype.itemsize
    vmem_cap = _vmem_capacity_bytes()
    hw_sub, n_sub, hw_pad, vmem_limit = _choose_tiling(B, C, HW, itemsize, vmem_cap)

    gamma1 = jnp.asarray(gamma, dtype=jnp.float32).reshape(C)

    xf = x.reshape(B, C, HW)
    if hw_pad != HW:
        # Padded spatial columns are independent of the channel reduction; they
        # are computed on zeros and sliced off below.
        xf = jnp.pad(xf, ((0, 0), (0, 0), (0, hw_pad - HW)))
    x4 = xf.reshape(B, C, n_sub, _LANE)

    grid_t = n_sub // hw_sub
    kernel = functools.partial(
        _ln_chan_kernel,
        eps=float(eps),
        inv_c=1.0 / C,
        n_chan=C,
        unroll=(C <= 64),
    )

    out = pl.pallas_call(
        kernel,
        out_shape=jax.ShapeDtypeStruct((B, C, n_sub, _LANE), x.dtype),
        grid_spec=pltpu.PrefetchScalarGridSpec(
            num_scalar_prefetch=0,
            grid=(B, grid_t),
            in_specs=[
                pl.BlockSpec((1, C, hw_sub, _LANE), lambda b, t: (b, 0, t, 0)),
                pl.BlockSpec(memory_space=pltpu.MemorySpace.SMEM),
            ],
            out_specs=pl.BlockSpec((1, C, hw_sub, _LANE), lambda b, t: (b, 0, t, 0)),
        ),
        compiler_params=pltpu.CompilerParams(
            dimension_semantics=("parallel", "parallel"),
            vmem_limit_bytes=vmem_limit,
        ),
    )(x4, gamma1)

    out = out.reshape(B, C, hw_pad)
    if hw_pad != HW:
        out = out[:, :, :HW]
    return out.reshape(B, C, H, W)


def layernorm_chan_ref(x, gamma, eps=1e-5):
    # Pure-JAX reference matching torch semantics (var unbiased=False over dim=1).
    mean = jnp.mean(x, axis=1, keepdims=True)
    var = jnp.mean((x - mean) ** 2, axis=1, keepdims=True)
    return (x - mean) / jnp.sqrt(var + eps) * jnp.asarray(gamma)


if __name__ == "__main__":
    key = jax.random.PRNGKey(0)

    # Main check: lane-aligned spatial size.
    B, C, H, W = 2, 4, 16, 16
    x = jax.random.normal(key, (B, C, H, W), dtype=jnp.float32)
    gamma = jnp.ones((1, C, 1, 1), dtype=jnp.float32)  # nn.Parameter(torch.ones(1,dim,1,1))

    out = jax.block_until_ready(layernorm_chan(x, gamma))
    ref = layernorm_chan_ref(x, gamma)
    assert out.shape == (B, C, H, W)
    assert jnp.allclose(out, ref, atol=1e-5, rtol=1e-5), "mismatch vs reference (aligned)"

    # Padding path check: HW not a multiple of 128.
    H2, W2 = 10, 10
    x2 = jax.random.normal(jax.random.PRNGKey(1), (B, C, H2, W2), dtype=jnp.float32)
    out2 = jax.block_until_ready(layernorm_chan(x2, gamma))
    ref2 = layernorm_chan_ref(x2, gamma)
    assert out2.shape == (B, C, H2, W2)
    assert jnp.allclose(out2, ref2, atol=1e-5, rtol=1e-5), "mismatch vs reference (padded)"

    print("KERNEL_OK")
</pallas_src>

<mosaic_0001>
module attributes {stable_mosaic.version = 11 : i64} {
  func.func @_ln_chan_kernel(%arg0: i32, %arg1: i32, %arg2: memref<1x4x2x128xf32, #tpu.memory_space<vmem>>, %arg3: memref<4xf32, #tpu.memory_space<smem>>, %arg4: memref<1x4x2x128xf32, #tpu.memory_space<vmem>>) attributes {dimension_semantics = [#tpu.dimension_semantics<parallel>, #tpu.dimension_semantics<parallel>], iteration_bounds = array<i64: 2, 1>, scalar_prefetch = 0 : i64, scratch_operands = 0 : i64, tpu.core_type = #tpu.core_type<tc>, window_params = [{transform_indices = @transform_0, window_bounds = array<i64: 1, 4, 2, 128>}, {transform_indices = @transform_1, window_bounds = array<i64: 4>}, {transform_indices = @transform_2, window_bounds = array<i64: 1, 4, 2, 128>}]} {
    %cst = arith.constant 0.000000e+00 : f32
    %0 = vector.broadcast %cst : f32 to vector<2x128xf32>
    %c0 = arith.constant 0 : index
    %c0_0 = arith.constant 0 : index
    %c0_1 = arith.constant 0 : index
    %c0_2 = arith.constant 0 : index
    %1 = vector.load %arg2[%c0, %c0_0, %c0_1, %c0_2] : memref<1x4x2x128xf32, #tpu.memory_space<vmem>>, vector<1x1x2x128xf32>
    %2 = vector.shape_cast %1 : vector<1x1x2x128xf32> to vector<2x128xf32>
    %3 = arith.addf %0, %2 : vector<2x128xf32>
    %4 = arith.mulf %2, %2 : vector<2x128xf32>
    %5 = arith.addf %0, %4 : vector<2x128xf32>
    %c0_3 = arith.constant 0 : index
    %c1 = arith.constant 1 : index
    %c0_4 = arith.constant 0 : index
    %c0_5 = arith.constant 0 : index
    %6 = vector.load %arg2[%c0_3, %c1, %c0_4, %c0_5] : memref<1x4x2x128xf32, #tpu.memory_space<vmem>>, vector<1x1x2x128xf32>
    %7 = vector.shape_cast %6 : vector<1x1x2x128xf32> to vector<2x128xf32>
    %8 = arith.addf %3, %7 : vector<2x128xf32>
    %9 = arith.mulf %7, %7 : vector<2x128xf32>
    %10 = arith.addf %5, %9 : vector<2x128xf32>
    %c0_6 = arith.constant 0 : index
    %c2 = arith.constant 2 : index
    %c0_7 = arith.constant 0 : index
    %c0_8 = arith.constant 0 : index
    %11 = vector.load %arg2[%c0_6, %c2, %c0_7, %c0_8] : memref<1x4x2x128xf32, #tpu.memory_space<vmem>>, vector<1x1x2x128xf32>
    %12 = vector.shape_cast %11 : vector<1x1x2x128xf32> to vector<2x128xf32>
    %13 = arith.addf %8, %12 : vector<2x128xf32>
    %14 = arith.mulf %12, %12 : vector<2x128xf32>
    %15 = arith.addf %10, %14 : vector<2x128xf32>
    %c0_9 = arith.constant 0 : index
    %c3 = arith.constant 3 : index
    %c0_10 = arith.constant 0 : index
    %c0_11 = arith.constant 0 : index
    %16 = vector.load %arg2[%c0_9, %c3, %c0_10, %c0_11] : memref<1x4x2x128xf32, #tpu.memory_space<vmem>>, vector<1x1x2x128xf32>
    %17 = vector.shape_cast %16 : vector<1x1x2x128xf32> to vector<2x128xf32>
    %18 = arith.addf %13, %17 : vector<2x128xf32>
    %19 = arith.mulf %17, %17 : vector<2x128xf32>
    %20 = arith.addf %15, %19 : vector<2x128xf32>
    %cst_12 = arith.constant 2.500000e-01 : f32
    %21 = vector.broadcast %cst_12 : f32 to vector<2x128xf32>
    %22 = arith.mulf %18, %21 : vector<2x128xf32>
    %cst_13 = arith.constant 2.500000e-01 : f32
    %23 = vector.broadcast %cst_13 : f32 to vector<2x128xf32>
    %24 = arith.mulf %20, %23 : vector<2x128xf32>
    %25 = arith.mulf %22, %22 : vector<2x128xf32>
    %26 = arith.subf %24, %25 : vector<2x128xf32>
    %cst_14 = arith.constant 0.000000e+00 : f32
    %27 = vector.broadcast %cst_14 : f32 to vector<2x128xf32>
    %28 = arith.maximumf %26, %27 : vector<2x128xf32>
    %cst_15 = arith.constant 9.99999974E-6 : f32
    %29 = vector.broadcast %cst_15 : f32 to vector<2x128xf32>
    %30 = arith.addf %28, %29 : vector<2x128xf32>
    %31 = math.rsqrt %30 : vector<2x128xf32>
    %c0_16 = arith.constant 0 : index
    %32 = memref.load %arg3[%c0_16] : memref<4xf32, #tpu.memory_space<smem>>
    %33 = vector.broadcast %32 : f32 to vector<2x128xf32>
    %34 = arith.mulf %31, %33 : vector<2x128xf32>
    %c0_17 = arith.constant 0 : index
    %c0_18 = arith.constant 0 : index
    %c0_19 = arith.constant 0 : index
    %c0_20 = arith.constant 0 : index
    %35 = vector.load %arg2[%c0_17, %c0_18, %c0_19, %c0_20] : memref<1x4x2x128xf32, #tpu.memory_space<vmem>>, vector<1x1x2x128xf32>
    %36 = vector.shape_cast %35 : vector<1x1x2x128xf32> to vector<2x128xf32>
    %37 = arith.subf %36, %22 : vector<2x128xf32>
    %38 = arith.mulf %37, %34 : vector<2x128xf32>
    %c0_21 = arith.constant 0 : index
    %c0_22 = arith.constant 0 : index
    %c0_23 = arith.constant 0 : index
    %c0_24 = arith.constant 0 : index
    %39 = vector.load %arg4[%c0_21, %c0_22, %c0_23, %c0_24] : memref<1x4x2x128xf32, #tpu.memory_space<vmem>>, vector<1x1x2x128xf32>
    %40 = vector.shape_cast %39 : vector<1x1x2x128xf32> to vector<2x128xf32>
    %41 = vector.shape_cast %38 : vector<2x128xf32> to vector<1x1x2x128xf32>
    tpu.vector_store %arg4[%c0_21, %c0_22, %c0_23, %c0_24], %41 {strides = array<i32>} : memref<1x4x2x128xf32, #tpu.memory_space<vmem>>, vector<1x1x2x128xf32>,
    %c1_25 = arith.constant 1 : index
    %42 = memref.load %arg3[%c1_25] : memref<4xf32, #tpu.memory_space<smem>>
    %43 = vector.broadcast %42 : f32 to vector<2x128xf32>
    %44 = arith.mulf %31, %43 : vector<2x128xf32>
    %c0_26 = arith.constant 0 : index
    %c1_27 = arith.constant 1 : index
    %c0_28 = arith.constant 0 : index
    %c0_29 = arith.constant 0 : index
    %45 = vector.load %arg2[%c0_26, %c1_27, %c0_28, %c0_29] : memref<1x4x2x128xf32, #tpu.memory_space<vmem>>, vector<1x1x2x128xf32>
    %46 = vector.shape_cast %45 : vector<1x1x2x128xf32> to vector<2x128xf32>
    %47 = arith.subf %46, %22 : vector<2x128xf32>
    %48 = arith.mulf %47, %44 : vector<2x128xf32>
    %c0_30 = arith.constant 0 : index
    %c1_31 = arith.constant 1 : index
    %c0_32 = arith.constant 0 : index
    %c0_33 = arith.constant 0 : index
    %49 = vector.load %arg4[%c0_30, %c1_31, %c0_32, %c0_33] : memref<1x4x2x128xf32, #tpu.memory_space<vmem>>, vector<1x1x2x128xf32>
    %50 = vector.shape_cast %49 : vector<1x1x2x128xf32> to vector<2x128xf32>
    %51 = vector.shape_cast %48 : vector<2x128xf32> to vector<1x1x2x128xf32>
    tpu.vector_store %arg4[%c0_30, %c1_31, %c0_32, %c0_33], %51 {strides = array<i32>} : memref<1x4x2x128xf32, #tpu.memory_space<vmem>>, vector<1x1x2x128xf32>,
    %c2_34 = arith.constant 2 : index
    %52 = memref.load %arg3[%c2_34] : memref<4xf32, #tpu.memory_space<smem>>
    %53 = vector.broadcast %52 : f32 to vector<2x128xf32>
    %54 = arith.mulf %31, %53 : vector<2x128xf32>
    %c0_35 = arith.constant 0 : index
    %c2_36 = arith.constant 2 : index
    %c0_37 = arith.constant 0 : index
    %c0_38 = arith.constant 0 : index
    %55 = vector.load %arg2[%c0_35, %c2_36, %c0_37, %c0_38] : memref<1x4x2x128xf32, #tpu.memory_space<vmem>>, vector<1x1x2x128xf32>
    %56 = vector.shape_cast %55 : vector<1x1x2x128xf32> to vector<2x128xf32>
    %57 = arith.subf %56, %22 : vector<2x128xf32>
    %58 = arith.mulf %57, %54 : vector<2x128xf32>
    %c0_39 = arith.constant 0 : index
    %c2_40 = arith.constant 2 : index
    %c0_41 = arith.constant 0 : index
    %c0_42 = arith.constant 0 : index
    %59 = vector.load %arg4[%c0_39, %c2_40, %c0_41, %c0_42] : memref<1x4x2x128xf32, #tpu.memory_space<vmem>>, vector<1x1x2x128xf32>
    %60 = vector.shape_cast %59 : vector<1x1x2x128xf32> to vector<2x128xf32>
    %61 = vector.shape_cast %58 : vector<2x128xf32> to vector<1x1x2x128xf32>
    tpu.vector_store %arg4[%c0_39, %c2_40, %c0_41, %c0_42], %61 {strides = array<i32>} : memref<1x4x2x128xf32, #tpu.memory_space<vmem>>, vector<1x1x2x128xf32>,
    %c3_43 = arith.constant 3 : index
    %62 = memref.load %arg3[%c3_43] : memref<4xf32, #tpu.memory_space<smem>>
    %63 = vector.broadcast %62 : f32 to vector<2x128xf32>
    %64 = arith.mulf %31, %63 : vector<2x128xf32>
    %c0_44 = arith.constant 0 : index
    %c3_45 = arith.constant 3 : index
    %c0_46 = arith.constant 0 : index
    %c0_47 = arith.constant 0 : index
    %65 = vector.load %arg2[%c0_44, %c3_45, %c0_46, %c0_47] : memref<1x4x2x128xf32, #tpu.memory_space<vmem>>, vector<1x1x2x128xf32>
    %66 = vector.shape_cast %65 : vector<1x1x2x128xf32> to vector<2x128xf32>
    %67 = arith.subf %66, %22 : vector<2x128xf32>
    %68 = arith.mulf %67, %64 : vector<2x128xf32>
    %c0_48 = arith.constant 0 : index
    %c3_49 = arith.constant 3 : index
    %c0_50 = arith.constant 0 : index
    %c0_51 = arith.constant 0 : index
    %69 = vector.load %arg4[%c0_48, %c3_49, %c0_50, %c0_51] : memref<1x4x2x128xf32, #tpu.memory_space<vmem>>, vector<1x1x2x128xf32>
    %70 = vector.shape_cast %69 : vector<1x1x2x128xf32> to vector<2x128xf32>
    %71 = vector.shape_cast %68 : vector<2x128xf32> to vector<1x1x2x128xf32>
    tpu.vector_store %arg4[%c0_48, %c3_49, %c0_50, %c0_51], %71 {strides = array<i32>} : memref<1x4x2x128xf32, #tpu.memory_space<vmem>>, vector<1x1x2x128xf32>,
    return
  }
  func.func @transform_0(%arg0: i32, %arg1: i32) -> (i32, i32, i32, i32) {
    %c0_i32 = arith.constant 0 : i32
    %c0_i32_0 = arith.constant 0 : i32
    %c0_i32_1 = arith.constant 0 : i32
    return %arg0, %c0_i32, %arg1, %c0_i32_0 : i32, i32, i32, i32
  }
  func.func @transform_1(%arg0: i32, %arg1: i32) -> i32 {
    %c0_i32 = arith.constant 0 : i32
    %c0_i32_0 = arith.constant 0 : i32
    return %c0_i32 : i32
  }
  func.func @transform_2(%arg0: i32, %arg1: i32) -> (i32, i32, i32, i32) {
    %c0_i32 = arith.constant 0 : i32
    %c0_i32_0 = arith.constant 0 : i32
    %c0_i32_1 = arith.constant 0 : i32
    return %arg0, %c0_i32, %arg1, %c0_i32_0 : i32, i32, i32, i32
  }
}

</mosaic_0001>

<llo_original>
// kernel: tpu_custom_call.1
$region0: #{tpu_custom_call.1}
  #allocation0 [shape = 'u32[]', space=smem, size = 0x4, offset = 0x4, fixed_abs, tag = 'smem constant byte address 0x4 - core index']
  #allocation1 [shape = 'u32[72,128]{1,0:T(1,128)}', space=vmem, size = 0x9000, scoped, tag = 'internal scratch']
  %s0 = inlined_call_operand.hbm [shape: f32[2,4,2,128], index: 0, kind: input, shape index: {}]
  %s1 = inlined_call_operand.hbm [shape: f32[4], index: 1, kind: input, shape index: {}]
  %s2 = inlined_call_operand.hbm [shape: f32[2,4,2,128], index: 2, kind: output, shape index: {}]
  %s3 = sld [smem:[#allocation0]]
  $region49: #{tpu_custom_call.1} parent=0
    _
  %s5 = ssub.s32 1, %s3
  %s6 = scalar_select 0, %s5, %s3
  $region1: #{tpu_custom_call.1} parent=0
    #allocation2 [shape = 'u8[8192]{0}', space=vmem, size = 0x2000, scoped, tag = 'input window, operand 0']
    #allocation3 [shape = 's32[2]{0}', space=sflag, size = 0x8, scoped, tag = 'scoped memory for tpu_custom_call.1']
    #allocation4 [shape = 's32[2]{0}', space=sflag, size = 0x8, scoped, tag = 'scoped memory for tpu_custom_call.1']
    #allocation5 [shape = 's32[2]{0}', space=sflag, size = 0x8, scoped, tag = 'scoped memory for tpu_custom_call.1']
    #allocation6 [shape = 'u8[512]{0}', space=smem, size = 0x200, scoped, tag = 'input window, operand 1, single buffered']
    #allocation7 [shape = 'u8[8192]{0}', space=vmem, size = 0x2000, scoped, tag = 'output window, operand 0']
    %7 = vsyncpa [#allocation3], 0
    %s8 = scalar_lea.sflag [#allocation3], 1
    %9 = vsyncpa %s8, 0
    %10 = vsyncpa [#allocation5], 0
    %11 = vsyncpa [#allocation4], 0
    %s12 = scalar_lea.sflag [#allocation4], 1
    %13 = vsyncpa %s12, 0
    loop: start=0, step=1, limit=4
    $region2: #{tpu_custom_call.1} parent=1 // loop_pre_header
      _
    $region3: #{tpu_custom_call.1} parent=1 // loop_header
      %s15 = sphi 0, %s19
      %p16 = scmp.ge.s32.totalorder %s15, 4
      %s22 = sphi 0, %s34
      %s23 = sphi 0, %s30
      %s24 = sphi 0, %s22
      %s25 = sphi 0, %s23
      %s26 = sphi 0, %s24
      %s27 = sphi 0, %s25
      %s39 = sphi 0, %s41
      %s42 = sphi 0, %s39
      %s43 = sphi 0, %s42
      %s59 = sphi 0, %s43
      %s63 = sphi 0, %s63
      %s65 = sphi 0, %s63
      %s66 = sphi 0, %s65
      %s80 = sphi 0, %s66
      %s88 = sphi 0, %s90
      %s91 = sphi 0, %s88
      %s92 = sphi 0, %s91
      %s108 = sphi 0, %s92
    $region4: #{tpu_custom_call.1} parent=1 // loop_header_branch
      %18 = sbr.rel (%p16) target = $region8
    $region5: #{tpu_custom_call.1} parent=1 // loop_body
      %s20 = ssub.s32 %s15, 1
      %s21 = ssub.s32 %s15, 2
      %s28 = sadd.s32 1, %s23
      %p29 = scmp.ge.s32.totalorder %s28, 1
      %s30 = scalar_select %p29, 0, %s28
      %s31 = sadd.s32 1, %s22
      %s32 = scalar_select %p29, %s31, %s22
      %p33 = scmp.ge.s32.totalorder %s32, 2
      %s34 = scalar_select %p33, 0, %s32
      %s35 = ssub.s32 %s22, %s34
      %s36 = ssub.s32 %s23, %s30
      %s37 = sor.u32 %s35, %s36
      %p38 = scmp.eq.s32.totalorder %s37, 0
      %s40 = sadd.s32 %s39, 1
      %s41 = scalar_select %p38, %s39, %s40
      %p44 = pneg %p38
      %p45 = scmp.eq.s32.totalorder %s15, 1
      %p46 = por %p44, %p45
      %p47 = scmp.ne.s32.totalorder %s39, %s42
      %p48 = scmp.eq.s32.totalorder %s15, 0
      %p49 = por %p47, %p48
      %p50 = scmp.ne.s32.totalorder %s39, %s42
      %p51 = scmp.eq.s32.totalorder %s20, 1
      %p52 = por %p50, %p51
      %p53 = scmp.ne.s32.totalorder %s42, %s43
      %p54 = scmp.eq.s32.totalorder %s20, 0
      %p55 = por %p53, %p54
      %p56 = scmp.ne.s32.totalorder %s42, %s43
      %p57 = scmp.eq.s32.totalorder %s21, 1
      %p58 = por %p56, %p57
      %p60 = scmp.ne.s32.totalorder %s43, %s59
      %p61 = scmp.eq.s32.totalorder %s21, 0
      %p62 = por %p60, %p61
      %s64 = sadd.s32 %s63, 1
      %p67 = scmp.eq.s32.totalorder %s15, 1
      %p68 = scmp.ne.s32.totalorder %s63, %s65
      %p69 = scmp.eq.s32.totalorder %s15, 0
      %p70 = por %p68, %p69
      %p71 = scmp.ne.s32.totalorder %s63, %s65
      %p72 = scmp.eq.s32.totalorder %s20, 1
      %p73 = por %p71, %p72
      %p74 = scmp.ne.s32.totalorder %s65, %s66
      %p75 = scmp.eq.s32.totalorder %s20, 0
      %p76 = por %p74, %p75
      %p77 = scmp.ne.s32.totalorder %s65, %s66
      %p78 = scmp.eq.s32.totalorder %s21, 1
      %p79 = por %p77, %p78
      %p81 = scmp.ne.s32.totalorder %s66, %s80
      %p82 = scmp.eq.s32.totalorder %s21, 0
      %p83 = por %p81, %p82
      %s84 = ssub.s32 %s22, %s34
      %s85 = ssub.s32 %s23, %s30
      %s86 = sor.u32 %s84, %s85
      %p87 = scmp.eq.s32.totalorder %s86, 0
      %s89 = sadd.s32 %s88, 1
      %s90 = scalar_select %p87, %s88, %s89
      %p93 = pneg %p87
      %p94 = scmp.eq.s32.totalorder %s15, 1
      %p95 = por %p93, %p94
      %p96 = scmp.ne.s32.totalorder %s88, %s91
      %p97 = scmp.eq.s32.totalorder %s15, 0
      %p98 = por %p96, %p97
      %p99 = scmp.ne.s32.totalorder %s88, %s91
      %p100 = scmp.eq.s32.totalorder %s20, 1
      %p101 = por %p99, %p100
      %p102 = scmp.ne.s32.totalorder %s91, %s92
      %p103 = scmp.eq.s32.totalorder %s20, 0
      %p104 = por %p102, %p103
      %p105 = scmp.ne.s32.totalorder %s91, %s92
      %p106 = scmp.eq.s32.totalorder %s21, 1
      %p107 = por %p105, %p106
      %p109 = scmp.ne.s32.totalorder %s92, %s108
      %p110 = scmp.eq.s32.totalorder %s21, 0
      %p111 = por %p109, %p110
      %p112 = scmp.le.s32.totalorder 1, %s15
      %p113 = scmp.lt.s32.totalorder %s15, 3
      %p114 = pnand %p112, %p113
      %p115 = pneg %p114
      // Predicated region
      $region9: #{tpu_custom_call.1} parent=5 // pred_check
        _
      $region10: #{tpu_custom_call.1} parent=5 // pred_check_branch
        %117 = sbr.rel (%p114) target = $region12
      $region11: #{tpu_custom_call.1} parent=5 // pred_region
        %s118 = ssub.s32 %s15, 1
        // Predicated region
        $region13: #{tpu_custom_call.1} parent=11 // pred_check
          %p119 = pneg %p76
        $region14: #{tpu_custom_call.1} parent=11 // pred_check_branch
          %121 = sbr.rel (%p119) target = $region16
        $region15: #{tpu_custom_call.1} parent=11 // pred_region
          %123 = vsyncadd [#allocation5], 0
          %s125 = sshll.u32 %s1, 4
          %s126 = int_to_ptr.hbm [resolvable:$true] %s125
          %128 = dma.hbm_to_smem %s126, 16, [#allocation6], [#allocation5]
        $region16: #{tpu_custom_call.1} parent=11 // pred_fallthru
          _
      $region12: #{tpu_custom_call.1} parent=5 // pred_fallthru
        _
      %p129 = scmp.lt.s32.totalorder %s15, 2
      // Predicated region
      $region17: #{tpu_custom_call.1} parent=5 // pred_check
        %p130 = pneg %p129
      $region18: #{tpu_custom_call.1} parent=5 // pred_check_branch
        %132 = sbr.rel (%p130) target = $region20
      $region19: #{tpu_custom_call.1} parent=5 // pred_region
        // Predicated region
        $region21: #{tpu_custom_call.1} parent=19 // pred_check
          %p133 = pneg %p49
        $region22: #{tpu_custom_call.1} parent=19 // pred_check_branch
          %135 = sbr.rel (%p133) target = $region24
        $region23: #{tpu_custom_call.1} parent=19 // pred_region
          %s136 = sand.u32 %s39, 1
          %s137 = scalar_lea.sflag [#allocation3], %s136
          %s138 = sand.u32 %s39, 1
          %s139 = smul.addr %s138, 8
          %s140 = scalar_lea.vmem [#allocation2], %s139
          %142 = vsyncadd %s137, 0
          %s143 = smul.addr %s22, 4
          %s144 = sadd.s32 %s23, %s143
          %s145 = smul.addr %s144, 2
          %s146 = scalar_lea.hbm %s0, %s145
          %s147 = sshll.u32 %s146, 4
          %s148 = int_to_ptr.hbm [resolvable:$true] %s147
          %s149 = sshll.u32 %s140, 4
          %s150 = int_to_ptr.vmem [resolvable:$true] %s149
          %155 = dma.hbm_to_vmem [thread:$0]  %s148, 128, %s150, %s137, 32, 32, 2
        $region24: #{tpu_custom_call.1} parent=19 // pred_fallthru
          _
      $region20: #{tpu_custom_call.1} parent=5 // pred_fallthru
        _
      %p156 = scmp.le.s32.totalorder 1, %s15
      %p157 = scmp.lt.s32.totalorder %s15, 3
      %p158 = pnand %p156, %p157
      %p159 = pneg %p158
      // Predicated region
      $region25: #{tpu_custom_call.1} parent=5 // pred_check
        _
      $region26: #{tpu_custom_call.1} parent=5 // pred_check_branch
        %161 = sbr.rel (%p158) target = $region28
      $region27: #{tpu_custom_call.1} parent=5 // pred_region
        %s162 = ssub.s32 %s15, 1
        %s163 = sand.u32 %s42, 1
        %s164 = scalar_lea.sflag [#allocation3], %s163
        %s165 = sand.u32 %s42, 1
        %s166 = smul.addr %s165, 8
        %s167 = scalar_lea.vmem [#allocation2], %s166
        // Predicated region
        $region29: #{tpu_custom_call.1} parent=27 // pred_check
          %p168 = pneg %p55
        $region30: #{tpu_custom_call.1} parent=27 // pred_check_branch
          %170 = sbr.rel (%p168) target = $region32
        $region31: #{tpu_custom_call.1} parent=27 // pred_region
          %172 = dma.done %s164, 128
        $region32: #{tpu_custom_call.1} parent=27 // pred_fallthru
          _
        // Predicated region
        $region33: #{tpu_custom_call.1} parent=27 // pred_check
          %p173 = pneg %p76
        $region34: #{tpu_custom_call.1} parent=27 // pred_check_branch
          %175 = sbr.rel (%p173) target = $region36
        $region35: #{tpu_custom_call.1} parent=27 // pred_region
          %177 = dma.done [#allocation5], 16
        $region36: #{tpu_custom_call.1} parent=27 // pred_fallthru
          _
        %178 = sfence
        %s179 = sand.u32 %s42, 1
        %s180 = scalar_lea.sflag [#allocation3], %s179
        %s181 = sand.u32 %s42, 1
        %s182 = smul.addr %s181, 8
        %s183 = scalar_lea.vmem [#allocation2], %s182
        %p184 = pneg %p55
        %p185 = pneg %p52
        %p186 = pneg %p76
        %p187 = pneg %p73
        %p188 = pneg %p104
        %p189 = pneg %p101
        %s190 = sand.u32 %s91, 1
        %s191 = scalar_lea.sflag [#allocation4], %s190
        %s192 = sand.u32 %s91, 1
        %s193 = smul.addr %s192, 8
        %s194 = scalar_lea.vmem [#allocation7], %s193
        %v195 = vld [vmem:[%s167] sm:$0x3]
        %v196 = vadd.f32 %v195, 0.0
        %v197 = vmul.f32 %v195, %v195
        %v198 = vadd.f32 %v197, 0.0
        %s199 = scalar_lea.vmem %s167, 2 [#allocation2]
        %v200 = vld [vmem:[%s199] sm:$0x3]
        %v201 = vadd.f32 %v196, %v200
        %v202 = vmul.f32 %v200, %v200
        %v203 = vadd.f32 %v198, %v202
        %s204 = scalar_lea.vmem %s167, 4 [#allocation2]
        %v205 = vld [vmem:[%s204] sm:$0x3]
        %v206 = vadd.f32 %v201, %v205
        %v207 = vmul.f32 %v205, %v205
        %v208 = vadd.f32 %v203, %v207
        %s209 = scalar_lea.vmem %s167, 6 [#allocation2]
        %v210 = vld [vmem:[%s209] sm:$0x3]
        %v211 = vadd.f32 %v206, %v210
        %v212 = vmul.f32 %v210, %v210
        %v213 = vadd.f32 %v208, %v212
        %v214 = vmul.f32 %v211, 0.25
        %v215 = vmul.f32 %v213, 0.25
        %v216 = vmul.f32 %v214, %v214
        %v217 = vsub.f32 %v215, %v216
        %v218 = vmax.f32 %v217, 0.0
        %v219 = vadd.f32 %v218, 1e-05
        %v220 = vrsqrt.pop %v219
        %v221 = vmul.f32 %v220, %v219
        %v222 = vmul.f32 %v221, %v220
        %v223 = vmul.f32 0.5, %v222
        %v224 = vsub.f32 1.5, %v223
        %v225 = vmul.f32 %v220, %v224
        %vm226 = vweird.f32 %v219
        %vm227 = vweird.f32 %v220
        %vm228 = vmor %vm226, %vm227
        %v229 = vsel %vm228, %v220, %v225
        %s230 = sld [smem:[#allocation6]]
        %v231 = vstv %s230
        %v232 = vmul.f32 %v229, %v231
        %v233 = vsub.f32 %v195, %v214
        %v234 = vmul.f32 %v233, %v232
        %235 = vst [vmem:[%s194] sm:$0x3] %v234
        %s236 = sld [smem:[#allocation6 + $0x1]]
        %v237 = vstv %s236
        %v238 = vmul.f32 %v229, %v237
        %v239 = vld [vmem:[%s199] sm:$0x3]
        %v240 = vsub.f32 %v239, %v214
        %v241 = vmul.f32 %v240, %v238
        %s242 = scalar_lea.vmem %s194, 2 [#allocation7]
        %243 = vst [vmem:[%s242] sm:$0x3] %v241
        %s244 = sld [smem:[#allocation6 + $0x2]]
        %v245 = vstv %s244
        %v246 = vmul.f32 %v229, %v245
        %v247 = vld [vmem:[%s204] sm:$0x3]
        %v248 = vsub.f32 %v247, %v214
        %v249 = vmul.f32 %v248, %v246
        %s250 = scalar_lea.vmem %s194, 4 [#allocation7]
        %251 = vst [vmem:[%s250] sm:$0x3] %v249
        %s252 = sld [smem:[#allocation6 + $0x3]]
        %v253 = vstv %s252
        %v254 = vmul.f32 %v229, %v253
        %v255 = vld [vmem:[%s209] sm:$0x3]
        %v256 = vsub.f32 %v255, %v214
        %v257 = vmul.f32 %v256, %v254
        %s258 = scalar_lea.vmem %s194, 6 [#allocation7]
        %259 = vst [vmem:[%s258] sm:$0x3] %v257
        %s260 = sand.u32 %s91, 1
        %s261 = scalar_lea.sflag [#allocation4], %s260
        %s262 = sand.u32 %s91, 1
        %s263 = smul.addr %s262, 8
        %s264 = scalar_lea.vmem [#allocation7], %s263
        // Predicated region
        $region37: #{tpu_custom_call.1} parent=27 // pred_check
          %p265 = pneg %p101
        $region38: #{tpu_custom_call.1} parent=27 // pred_check_branch
          %267 = sbr.rel (%p265) target = $region40
        $region39: #{tpu_custom_call.1} parent=27 // pred_region
          %269 = vsyncadd %s261, 0
          %s270 = smul.addr %s24, 4
          %s271 = sadd.s32 %s25, %s270
          %s272 = smul.addr %s271, 2
          %s273 = scalar_lea.hbm %s2, %s272
          %s274 = sshll.u32 %s264, 4
          %s275 = int_to_ptr.vmem [resolvable:$true] %s274
          %s276 = sshll.u32 %s273, 4
          %s277 = int_to_ptr.hbm [resolvable:$true] %s276
          %282 = dma.vmem_to_hbm [thread:$0]  %s275, 128, %s277, %s261, 32, 32, 2
        $region40: #{tpu_custom_call.1} parent=27 // pred_fallthru
          _
      $region28: #{tpu_custom_call.1} parent=5 // pred_fallthru
        _
      %p283 = scmp.le.s32.totalorder 2, %s15
      // Predicated region
      $region41: #{tpu_custom_call.1} parent=5 // pred_check
        %p284 = pneg %p283
      $region42: #{tpu_custom_call.1} parent=5 // pred_check_branch
        %286 = sbr.rel (%p284) target = $region44
      $region43: #{tpu_custom_call.1} parent=5 // pred_region
        %s287 = ssub.s32 %s15, 2
        // Predicated region
        $region45: #{tpu_custom_call.1} parent=43 // pred_check
          %p288 = pneg %p107
        $region46: #{tpu_custom_call.1} parent=43 // pred_check_branch
          %290 = sbr.rel (%p288) target = $region48
        $region47: #{tpu_custom_call.1} parent=43 // pred_region
          %s291 = sand.u32 %s92, 1
          %s292 = scalar_lea.sflag [#allocation4], %s291
          %s293 = sand.u32 %s92, 1
          %s294 = smul.addr %s293, 8
          %s295 = scalar_lea.vmem [#allocation7], %s294
          %297 = dma.done %s292, 128
        $region48: #{tpu_custom_call.1} parent=43 // pred_fallthru
          _
      $region44: #{tpu_custom_call.1} parent=5 // pred_fallthru
        _
    $region6: #{tpu_custom_call.1} parent=1 // loop_footer
      %s19 = sadd.s32 1, %s15
    $region7: #{tpu_custom_call.1} parent=1 // loop_footer_branch
      %14 = sbr.rel target = $region3
    $region8: #{tpu_custom_call.1} parent=1 // loop_exit
      _
    %298 = vsyncpa [#allocation3], 1
    %s299 = scalar_lea.sflag [#allocation3], 1
    %300 = vsyncpa %s299, 1
    %301 = vsyncpa [#allocation4], 1
    %s302 = scalar_lea.sflag [#allocation4], 1
    %303 = vsyncpa %s302, 1
    %304 = vsyncpa [#allocation5], 1
    %s305 = scalar_lea.sflag [#allocation5], 1
    %306 = vsyncpa %s305, 1

</llo_original>
